<compile_context>
chip_gen: v6e
topology: v6e:2x2x1
jax: 0.10.0
libtpu: 0.0.40
codegen_flags: <defaults>
</compile_context>

<pallas_src>
import jax
import jax.numpy as jnp
from jax.experimental import pallas as pl
from jax.experimental.pallas import tpu as pltpu


def _round_up(x, m):
    return -(-x // m) * m


def _make_root_kernel(n_inputs):
    """Kernel over refs, in order:
         x_0..x_{k-1}  : (1, cin_i, ts)   NCHW activation slab (spatial on lanes)
         w_0..w_{k-1}  : (cout, cin_i)    BN-scale-folded weight slice
         shift         : (cout, 1)        folded BN shift (beta - mean*scale)
         out           : (1, cout, ts)
    """

    def kernel(*refs):
        x_refs = refs[:n_inputs]
        w_refs = refs[n_inputs:2 * n_inputs]
        shift_ref = refs[2 * n_inputs]
        o_ref = refs[2 * n_inputs + 1]

        # Seed the accumulator with the broadcast BN shift plus the first
        # slice's contraction: removes the zero-fill pass and the separate
        # epilogue add (two full-tile VPU passes per grid step).
        acc = shift_ref[...] + jnp.dot(w_refs[0][...], x_refs[0][0],
                                       preferred_element_type=jnp.float32)
        for x_ref, w_ref in zip(x_refs[1:], w_refs[1:]):
            acc = acc + jnp.dot(w_ref[...], x_ref[0],
                                preferred_element_type=jnp.float32)
        o_ref[0] = jnp.maximum(acc, 0.0).astype(o_ref.dtype)

    return kernel


def _vmem_limit_bytes():
    """Generation-aware scoped-VMEM limit: ~75% of physical VMEM, capped at
    96 MiB (v5e/v6e: 128 MiB physical -> 96 MiB; v7x: 64 MiB -> 48 MiB)."""
    try:
        cap = int(pltpu.get_tpu_info().vmem_capacity_bytes)
    except Exception:
        cap = 64 * 1024 * 1024  # conservative fallback: assume v7x
    return min(cap * 3 // 4, 96 * 1024 * 1024)


def _pick_spatial_tile(hw128, per_lane_bytes, vmem_budget, target_lanes=2048):
    """Largest multiple-of-128 divisor of hw128 that fits the VMEM budget,
    stays <= target_lanes, leaves >= 2 spatial grid steps whenever possible,
    and prefers >= 4 steps as long as the tile stays >= 512 lanes
    (512-2048-lane tiles hit ~85% of HBM roofline; 128-lane tiles ~29%)."""
    cap = (vmem_budget // per_lane_bytes) // 128 * 128
    cap = max(128, min(cap, target_lanes))
    # Aim for >= 4 spatial steps, but never force tiles below 512 lanes for it.
    step_cap = max(512, (hw128 // 4) // 128 * 128)
    cap = min(cap, step_cap)

    n_blocks = hw128 // 128
    best = None
    for k in range(1, n_blocks + 1):
        ts = k * 128
        if ts > cap:
            break
        if n_blocks % k == 0 and (hw128 // ts >= 2 or hw128 == 128):
            best = ts
    return best if best is not None else 128


@jax.jit
def root_forward(xs, weight, gamma, beta, running_mean, running_var, eps=1e-5):
    """xs: list/tuple of NCHW float32 arrays; weight: (Cout, Cin_total, 1, 1)."""
    xs = list(xs)
    n_inputs = len(xs)
    n, _, h, w_sp = xs[0].shape
    hw = h * w_sp
    cins = [int(x.shape[1]) for x in xs]
    cin_total = sum(cins)
    cout = int(weight.shape[0])
    assert weight.shape[1] == cin_total
    assert weight.shape[2] == 1 and weight.shape[3] == 1, "only 1x1 conv supported"

    # Fold BatchNorm (inference stats): scale into the weight, keep the shift.
    scale = gamma * jax.lax.rsqrt(running_var + eps)              # (Cout,)
    w2d = weight.reshape(cout, cin_total) * scale[:, None]        # (Cout, Cin)
    shift = (beta - running_mean * scale).reshape(cout, 1)        # (Cout, 1)

    # Split the folded weight along Cin so the concat never materializes.
    w_slices, off = [], 0
    for c in cins:
        w_slices.append(w2d[:, off:off + c])
        off += c

    # NCHW-native slabs: (N, Cin_i, H*W) — free reshape, no transpose.
    x_slabs = [x.reshape(n, c, hw) for x, c in zip(xs, cins)]

    # Pad the spatial axis to a multiple of 128 so tiles stay lane-dense and
    # tile-size choice is never forced to the full extent; pad is sliced off.
    hw128 = _round_up(hw, 128)
    if hw128 != hw:
        x_slabs = [jnp.pad(x, ((0, 0), (0, 0), (0, hw128 - hw)))
                   for x in x_slabs]

    # Per-lane VMEM cost: double-buffered activation + output tiles (with
    # sublane padding of sub-8 channel counts) plus the f32 accumulator.
    padded_cin = sum(_round_up(c, 8) for c in cins)
    padded_cout = _round_up(cout, 8)
    per_lane_bytes = 4 * (2 * padded_cin + 2 * padded_cout) + 4 * padded_cout

    vmem_limit = _vmem_limit_bytes()
    ts = _pick_spatial_tile(hw128, per_lane_bytes, vmem_budget=vmem_limit // 2)
    grid = (n, hw128 // ts)

    x_specs = [pl.BlockSpec((1, c, ts), lambda b, s: (b, 0, s)) for c in cins]
    w_specs = [pl.BlockSpec((cout, c), lambda b, s: (0, 0)) for c in cins]
    shift_spec = pl.BlockSpec((cout, 1), lambda b, s: (0, 0))

    out3d = pl.pallas_call(
        _make_root_kernel(n_inputs),
        out_shape=jax.ShapeDtypeStruct((n, cout, hw128), jnp.float32),
        grid_spec=pltpu.PrefetchScalarGridSpec(
            num_scalar_prefetch=0,
            grid=grid,
            in_specs=x_specs + w_specs + [shift_spec],
            out_specs=pl.BlockSpec((1, cout, ts), lambda b, s: (b, 0, s)),
        ),
        compiler_params=pltpu.CompilerParams(
            dimension_semantics=("parallel", "parallel"),
            vmem_limit_bytes=vmem_limit),
    )(*x_slabs, *w_slices, shift)

    out3d = out3d[:, :, :hw]                       # drop spatial padding
    return out3d.reshape(n, cout, h, w_sp)         # free reshape, still NCHW


if __name__ == "__main__":
    key = jax.random.PRNGKey(0)
    k1, k2, k3 = jax.random.split(key, 3)

    # Two feature maps to be concatenated (as DLA's Root does): 4 + 4 channels.
    N, H, W = 2, 16, 16
    c1, c2 = 4, 4
    in_channels = c1 + c2
    out_channels = 8

    x1 = jax.random.normal(k1, (N, c1, H, W), dtype=jnp.float32)
    x2 = jax.random.normal(k2, (N, c2, H, W), dtype=jnp.float32)

    # Shapes match nn.Conv2d(8, 8, 1, bias=False) and nn.BatchNorm2d(8).
    weight = jax.random.normal(k3, (out_channels, in_channels, 1, 1),
                               dtype=jnp.float32) * 0.1
    gamma = jnp.ones((out_channels,), jnp.float32)
    beta = jnp.zeros((out_channels,), jnp.float32)
    running_mean = jnp.zeros((out_channels,), jnp.float32)
    running_var = jnp.ones((out_channels,), jnp.float32)

    out = root_forward([x1, x2], weight, gamma, beta, running_mean, running_var)
    jax.block_until_ready(out)

    # Correctness check against a pure-JAX reference.
    xcat = jnp.concatenate([x1, x2], axis=1)
    ref = jax.lax.conv_general_dilated(
        xcat, weight, window_strides=(1, 1), padding="VALID",
        dimension_numbers=("NCHW", "OIHW", "NCHW"))
    ref = (ref - running_mean[None, :, None, None]) / jnp.sqrt(
        running_var[None, :, None, None] + 1e-5)
    ref = jnp.maximum(ref * gamma[None, :, None, None]
                      + beta[None, :, None, None], 0.0)
    assert out.shape == (N, out_channels, H, W)
    assert jnp.max(jnp.abs(out - ref)) < 1e-4

    print("KERNEL_OK")
</pallas_src>

<mosaic_0001>
module attributes {stable_mosaic.version = 11 : i64} {
  func.func @kernel(%arg0: i32, %arg1: i32, %arg2: memref<1x4x128xf32, #tpu.memory_space<vmem>>, %arg3: memref<1x4x128xf32, #tpu.memory_space<vmem>>, %arg4: memref<8x4xf32, #tpu.memory_space<vmem>>, %arg5: memref<8x4xf32, #tpu.memory_space<vmem>>, %arg6: memref<8x1xf32, #tpu.memory_space<vmem>>, %arg7: memref<1x8x128xf32, #tpu.memory_space<vmem>>) attributes {dimension_semantics = [#tpu.dimension_semantics<parallel>, #tpu.dimension_semantics<parallel>], iteration_bounds = array<i64: 2, 2>, scalar_prefetch = 0 : i64, scratch_operands = 0 : i64, tpu.core_type = #tpu.core_type<tc>, window_params = [{transform_indices = @transform_0, window_bounds = array<i64: 1, 4, 128>}, {transform_indices = @transform_1, window_bounds = array<i64: 1, 4, 128>}, {pipeline_mode = #tpu.pipeline_mode<synchronous>, transform_indices = @transform_2, window_bounds = array<i64: 8, 4>}, {pipeline_mode = #tpu.pipeline_mode<synchronous>, transform_indices = @transform_3, window_bounds = array<i64: 8, 4>}, {pipeline_mode = #tpu.pipeline_mode<synchronous>, transform_indices = @transform_4, window_bounds = array<i64: 8, 1>}, {transform_indices = @transform_5, window_bounds = array<i64: 1, 8, 128>}]} {
    %c0 = arith.constant 0 : index
    %c0_0 = arith.constant 0 : index
    %0 = vector.load %arg6[%c0, %c0_0] : memref<8x1xf32, #tpu.memory_space<vmem>>, vector<8x1xf32>
    %c0_1 = arith.constant 0 : index
    %c0_2 = arith.constant 0 : index
    %1 = vector.load %arg4[%c0_1, %c0_2] : memref<8x4xf32, #tpu.memory_space<vmem>>, vector<8x4xf32>
    %c0_3 = arith.constant 0 : index
    %c0_4 = arith.constant 0 : index
    %c0_5 = arith.constant 0 : index
    %2 = vector.load %arg2[%c0_3, %c0_4, %c0_5] : memref<1x4x128xf32, #tpu.memory_space<vmem>>, vector<1x4x128xf32>
    %3 = vector.shape_cast %2 : vector<1x4x128xf32> to vector<4x128xf32>
    %cst = arith.constant dense<0.000000e+00> : vector<8x128xf32>
    %4 = tpu.matmul %1, %3, %cst {dimension_numbers = #tpu.dot_dimension_numbers<[1], [0], [0], [1], [0, 0, 1, 1], [], []>} : vector<8x4xf32>, vector<4x128xf32>, vector<8x128xf32> -> vector<8x128xf32>
    %5 = vector.broadcast %0 : vector<8x1xf32> to vector<8x128xf32>
    %6 = arith.addf %5, %4 : vector<8x128xf32>
    %c0_6 = arith.constant 0 : index
    %c0_7 = arith.constant 0 : index
    %7 = vector.load %arg5[%c0_6, %c0_7] : memref<8x4xf32, #tpu.memory_space<vmem>>, vector<8x4xf32>
    %c0_8 = arith.constant 0 : index
    %c0_9 = arith.constant 0 : index
    %c0_10 = arith.constant 0 : index
    %8 = vector.load %arg3[%c0_8, %c0_9, %c0_10] : memref<1x4x128xf32, #tpu.memory_space<vmem>>, vector<1x4x128xf32>
    %9 = vector.shape_cast %8 : vector<1x4x128xf32> to vector<4x128xf32>
    %cst_11 = arith.constant dense<0.000000e+00> : vector<8x128xf32>
    %10 = tpu.matmul %7, %9, %cst_11 {dimension_numbers = #tpu.dot_dimension_numbers<[1], [0], [0], [1], [0, 0, 1, 1], [], []>} : vector<8x4xf32>, vector<4x128xf32>, vector<8x128xf32> -> vector<8x128xf32>
    %11 = arith.addf %6, %10 : vector<8x128xf32>
    %cst_12 = arith.constant 0.000000e+00 : f32
    %12 = vector.broadcast %cst_12 : f32 to vector<8x128xf32>
    %13 = arith.maximumf %11, %12 : vector<8x128xf32>
    %c0_13 = arith.constant 0 : index
    %c0_14 = arith.constant 0 : index
    %c0_15 = arith.constant 0 : index
    %14 = vector.load %arg7[%c0_13, %c0_14, %c0_15] : memref<1x8x128xf32, #tpu.memory_space<vmem>>, vector<1x8x128xf32>
    %15 = vector.shape_cast %14 : vector<1x8x128xf32> to vector<8x128xf32>
    %16 = vector.shape_cast %13 : vector<8x128xf32> to vector<1x8x128xf32>
    tpu.vector_store %arg7[%c0_13, %c0_14, %c0_15], %16 {strides = array<i32>} : memref<1x8x128xf32, #tpu.memory_space<vmem>>, vector<1x8x128xf32>,
    return
  }
  func.func @transform_0(%arg0: i32, %arg1: i32) -> (i32, i32, i32) {
    %c0_i32 = arith.constant 0 : i32
    %c0_i32_0 = arith.constant 0 : i32
    return %arg0, %c0_i32, %arg1 : i32, i32, i32
  }
  func.func @transform_1(%arg0: i32, %arg1: i32) -> (i32, i32, i32) {
    %c0_i32 = arith.constant 0 : i32
    %c0_i32_0 = arith.constant 0 : i32
    return %arg0, %c0_i32, %arg1 : i32, i32, i32
  }
  func.func @transform_2(%arg0: i32, %arg1: i32) -> (i32, i32) {
    %c0_i32 = arith.constant 0 : i32
    %c0_i32_0 = arith.constant 0 : i32
    %c0_i32_1 = arith.constant 0 : i32
    return %c0_i32, %c0_i32_0 : i32, i32
  }
  func.func @transform_3(%arg0: i32, %arg1: i32) -> (i32, i32) {
    %c0_i32 = arith.constant 0 : i32
    %c0_i32_0 = arith.constant 0 : i32
    %c0_i32_1 = arith.constant 0 : i32
    return %c0_i32, %c0_i32_0 : i32, i32
  }
  func.func @transform_4(%arg0: i32, %arg1: i32) -> (i32, i32) {
    %c0_i32 = arith.constant 0 : i32
    %c0_i32_0 = arith.constant 0 : i32
    %c0_i32_1 = arith.constant 0 : i32
    return %c0_i32, %c0_i32_0 : i32, i32
  }
  func.func @transform_5(%arg0: i32, %arg1: i32) -> (i32, i32, i32) {
    %c0_i32 = arith.constant 0 : i32
    %c0_i32_0 = arith.constant 0 : i32
    return %arg0, %c0_i32, %arg1 : i32, i32, i32
  }
}

</mosaic_0001>

<llo_original>
// kernel: root_forward.1
$region0: #{root_forward.1}
  #allocation0 [shape = 'u32[]', space=smem, size = 0x4, offset = 0x4, fixed_abs, tag = 'smem constant byte address 0x4 - core index']
  #allocation1 [shape = 'u32[144,128]{1,0:T(1,128)}', space=vmem, size = 0x12000, scoped, tag = 'internal scratch']
  %s0 = inlined_call_operand.vmem [shape: f32[2,4,256], index: 0, kind: input, shape index: {}]
  %s1 = inlined_call_operand.vmem [shape: f32[2,4,256], index: 1, kind: input, shape index: {}]
  %s2 = inlined_call_operand.vmem [shape: f32[8,4], index: 2, kind: input, shape index: {}]
  %s3 = inlined_call_operand.vmem [shape: f32[8,4], index: 3, kind: input, shape index: {}]
  %s4 = inlined_call_operand.vmem [shape: f32[8,1], index: 4, kind: input, shape index: {}]
  %s5 = inlined_call_operand.vmem [shape: f32[2,8,256], index: 5, kind: output, shape index: {}]
  %s6 = sld [smem:[#allocation0]]
  $region53: #{root_forward.1} parent=0
    _
  %s8 = ssub.s32 1, %s6
  %s9 = scalar_select 0, %s8, %s6
  loop: start=0, step=1, limit=6
  $region2: #{root_forward.1} parent=0 // loop_pre_header
    _
  $region3: #{root_forward.1} parent=0 // loop_header
    %s11 = sphi 0, %s15
    %p12 = scmp.ge.s32.totalorder %s11, 6
    %s18 = sphi 0, %s30
    %s19 = sphi 0, %s26
    %s20 = sphi 0, %s18
    %s21 = sphi 0, %s19
    %s22 = sphi 0, %s20
    %s23 = sphi 0, %s21
    %s35 = sphi 0, %s37
    %s38 = sphi 0, %s35
    %s39 = sphi 0, %s38
    %s55 = sphi 0, %s39
    %s63 = sphi 0, %s65
    %s66 = sphi 0, %s63
    %s67 = sphi 0, %s66
    %s83 = sphi 0, %s67
    %s87 = sphi 0, %s87
    %s89 = sphi 0, %s87
    %s90 = sphi 0, %s89
    %s104 = sphi 0, %s90
    %s108 = sphi 0, %s108
    %s110 = sphi 0, %s108
    %s111 = sphi 0, %s110
    %s125 = sphi 0, %s111
    %s129 = sphi 0, %s129
    %s131 = sphi 0, %s129
    %s132 = sphi 0, %s131
    %s146 = sphi 0, %s132
    %s154 = sphi 0, %s156
    %s157 = sphi 0, %s154
    %s158 = sphi 0, %s157
    %s174 = sphi 0, %s158
  $region4: #{root_forward.1} parent=0 // loop_header_branch
    %14 = sbr.rel (%p12) target = $region8
  $region5: #{root_forward.1} parent=0 // loop_body
    %s16 = ssub.s32 %s11, 1
    %s17 = ssub.s32 %s11, 2
    %s24 = sadd.s32 1, %s19
    %p25 = scmp.ge.s32.totalorder %s24, 2
    %s26 = scalar_select %p25, 0, %s24
    %s27 = sadd.s32 1, %s18
    %s28 = scalar_select %p25, %s27, %s18
    %p29 = scmp.ge.s32.totalorder %s28, 2
    %s30 = scalar_select %p29, 0, %s28
    %s31 = ssub.s32 %s18, %s30
    %s32 = ssub.s32 %s19, %s26
    %s33 = sor.u32 %s31, %s32
    %p34 = scmp.eq.s32.totalorder %s33, 0
    %s36 = sadd.s32 %s35, 1
    %s37 = scalar_select %p34, %s35, %s36
    %p40 = pneg %p34
    %p41 = scmp.eq.s32.totalorder %s11, 3
    %p42 = por %p40, %p41
    %p43 = scmp.ne.s32.totalorder %s35, %s38
    %p44 = scmp.eq.s32.totalorder %s11, 0
    %p45 = por %p43, %p44
    %p46 = scmp.ne.s32.totalorder %s35, %s38
    %p47 = scmp.eq.s32.totalorder %s16, 3
    %p48 = por %p46, %p47
    %p49 = scmp.ne.s32.totalorder %s38, %s39
    %p50 = scmp.eq.s32.totalorder %s16, 0
    %p51 = por %p49, %p50
    %p52 = scmp.ne.s32.totalorder %s38, %s39
    %p53 = scmp.eq.s32.totalorder %s17, 3
    %p54 = por %p52, %p53
    %p56 = scmp.ne.s32.totalorder %s39, %s55
    %p57 = scmp.eq.s32.totalorder %s17, 0
    %p58 = por %p56, %p57
    %s59 = ssub.s32 %s18, %s30
    %s60 = ssub.s32 %s19, %s26
    %s61 = sor.u32 %s59, %s60
    %p62 = scmp.eq.s32.totalorder %s61, 0
    %s64 = sadd.s32 %s63, 1
    %s65 = scalar_select %p62, %s63, %s64
    %p68 = pneg %p62
    %p69 = scmp.eq.s32.totalorder %s11, 3
    %p70 = por %p68, %p69
    %p71 = scmp.ne.s32.totalorder %s63, %s66
    %p72 = scmp.eq.s32.totalorder %s11, 0
    %p73 = por %p71, %p72
    %p74 = scmp.ne.s32.totalorder %s63, %s66
    %p75 = scmp.eq.s32.totalorder %s16, 3
    %p76 = por %p74, %p75
    %p77 = scmp.ne.s32.totalorder %s66, %s67
    %p78 = scmp.eq.s32.totalorder %s16, 0
    %p79 = por %p77, %p78
    %p80 = scmp.ne.s32.totalorder %s66, %s67
    %p81 = scmp.eq.s32.totalorder %s17, 3
    %p82 = por %p80, %p81
    %p84 = scmp.ne.s32.totalorder %s67, %s83
    %p85 = scmp.eq.s32.totalorder %s17, 0
    %p86 = por %p84, %p85
    %s88 = sadd.s32 %s87, 1
    %p91 = scmp.eq.s32.totalorder %s11, 3
    %p92 = scmp.ne.s32.totalorder %s87, %s89
    %p93 = scmp.eq.s32.totalorder %s11, 0
    %p94 = por %p92, %p93
    %p95 = scmp.ne.s32.totalorder %s87, %s89
    %p96 = scmp.eq.s32.totalorder %s16, 3
    %p97 = por %p95, %p96
    %p98 = scmp.ne.s32.totalorder %s89, %s90
    %p99 = scmp.eq.s32.totalorder %s16, 0
    %p100 = por %p98, %p99
    %p101 = scmp.ne.s32.totalorder %s89, %s90
    %p102 = scmp.eq.s32.totalorder %s17, 3
    %p103 = por %p101, %p102
    %p105 = scmp.ne.s32.totalorder %s90, %s104
    %p106 = scmp.eq.s32.totalorder %s17, 0
    %p107 = por %p105, %p106
    %s109 = sadd.s32 %s108, 1
    %p112 = scmp.eq.s32.totalorder %s11, 3
    %p113 = scmp.ne.s32.totalorder %s108, %s110
    %p114 = scmp.eq.s32.totalorder %s11, 0
    %p115 = por %p113, %p114
    %p116 = scmp.ne.s32.totalorder %s108, %s110
    %p117 = scmp.eq.s32.totalorder %s16, 3
    %p118 = por %p116, %p117
    %p119 = scmp.ne.s32.totalorder %s110, %s111
    %p120 = scmp.eq.s32.totalorder %s16, 0
    %p121 = por %p119, %p120
    %p122 = scmp.ne.s32.totalorder %s110, %s111
    %p123 = scmp.eq.s32.totalorder %s17, 3
    %p124 = por %p122, %p123
    %p126 = scmp.ne.s32.totalorder %s111, %s125
    %p127 = scmp.eq.s32.totalorder %s17, 0
    %p128 = por %p126, %p127
    %s130 = sadd.s32 %s129, 1
    %p133 = scmp.eq.s32.totalorder %s11, 3
    %p134 = scmp.ne.s32.totalorder %s129, %s131
    %p135 = scmp.eq.s32.totalorder %s11, 0
    %p136 = por %p134, %p135
    %p137 = scmp.ne.s32.totalorder %s129, %s131
    %p138 = scmp.eq.s32.totalorder %s16, 3
    %p139 = por %p137, %p138
    %p140 = scmp.ne.s32.totalorder %s131, %s132
    %p141 = scmp.eq.s32.totalorder %s16, 0
    %p142 = por %p140, %p141
    %p143 = scmp.ne.s32.totalorder %s131, %s132
    %p144 = scmp.eq.s32.totalorder %s17, 3
    %p145 = por %p143, %p144
    %p147 = scmp.ne.s32.totalorder %s132, %s146
    %p148 = scmp.eq.s32.totalorder %s17, 0
    %p149 = por %p147, %p148
    %s150 = ssub.s32 %s18, %s30
    %s151 = ssub.s32 %s19, %s26
    %s152 = sor.u32 %s150, %s151
    %p153 = scmp.eq.s32.totalorder %s152, 0
    %s155 = sadd.s32 %s154, 1
    %s156 = scalar_select %p153, %s154, %s155
    %p159 = pneg %p153
    %p160 = scmp.eq.s32.totalorder %s11, 3
    %p161 = por %p159, %p160
    %p162 = scmp.ne.s32.totalorder %s154, %s157
    %p163 = scmp.eq.s32.totalorder %s11, 0
    %p164 = por %p162, %p163
    %p165 = scmp.ne.s32.totalorder %s154, %s157
    %p166 = scmp.eq.s32.totalorder %s16, 3
    %p167 = por %p165, %p166
    %p168 = scmp.ne.s32.totalorder %s157, %s158
    %p169 = scmp.eq.s32.totalorder %s16, 0
    %p170 = por %p168, %p169
    %p171 = scmp.ne.s32.totalorder %s157, %s158
    %p172 = scmp.eq.s32.totalorder %s17, 3
    %p173 = por %p171, %p172
    %p175 = scmp.ne.s32.totalorder %s158, %s174
    %p176 = scmp.eq.s32.totalorder %s17, 0
    %p177 = por %p175, %p176
    %p178 = scmp.le.s32.totalorder 1, %s11
    %p179 = scmp.lt.s32.totalorder %s11, 5
    %p180 = pnand %p178, %p179
    %p181 = pneg %p180
    // Predicated region
    $region9: #{root_forward.1} parent=5 // pred_check
      _
    $region10: #{root_forward.1} parent=5 // pred_check_branch
      %183 = sbr.rel (%p180) target = $region12
    $region11: #{root_forward.1} parent=5 // pred_region
      %s184 = ssub.s32 %s11, 1
      // Predicated region
      $region13: #{root_forward.1} parent=11 // pred_check
        %p185 = pneg %p100
      $region14: #{root_forward.1} parent=11 // pred_check_branch
        %187 = sbr.rel (%p185) target = $region16
      $region15: #{root_forward.1} parent=11 // pred_region
        _
      $region16: #{root_forward.1} parent=11 // pred_fallthru
        _
      // Predicated region
      $region17: #{root_forward.1} parent=11 // pred_check
        %p188 = pneg %p121
      $region18: #{root_forward.1} parent=11 // pred_check_branch
        %190 = sbr.rel (%p188) target = $region20
      $region19: #{root_forward.1} parent=11 // pred_region
        _
      $region20: #{root_forward.1} parent=11 // pred_fallthru
        _
      // Predicated region
      $region21: #{root_forward.1} parent=11 // pred_check
        %p191 = pneg %p142
      $region22: #{root_forward.1} parent=11 // pred_check_branch
        %193 = sbr.rel (%p191) target = $region24
      $region23: #{root_forward.1} parent=11 // pred_region
        _
      $region24: #{root_forward.1} parent=11 // pred_fallthru
        _
    $region12: #{root_forward.1} parent=5 // pred_fallthru
      _
    %p194 = scmp.lt.s32.totalorder %s11, 4
    // Predicated region
    $region25: #{root_forward.1} parent=5 // pred_check
      %p195 = pneg %p194
    $region26: #{root_forward.1} parent=5 // pred_check_branch
      %197 = sbr.rel (%p195) target = $region28
    $region27: #{root_forward.1} parent=5 // pred_region
      // Predicated region
      $region29: #{root_forward.1} parent=27 // pred_check
        %p198 = pneg %p45
      $region30: #{root_forward.1} parent=27 // pred_check_branch
        %200 = sbr.rel (%p198) target = $region32
      $region31: #{root_forward.1} parent=27 // pred_region
        %p201 = scmp.lt.s32.totalorder %s18, 1
        %s202 = scalar_select %p201, %s18, 1
        %p203 = scmp.lt.s32.totalorder %s19, 1
        %s204 = scalar_select %p203, %s19, 1
        %s205 = smul.addr %s202, 2
        %s206 = sadd.s32 %s204, %s205
        %s207 = smul.addr %s206, 4
        %s208 = scalar_lea.vmem %s0, %s207
      $region32: #{root_forward.1} parent=27 // pred_fallthru
        _
      // Predicated region
      $region33: #{root_forward.1} parent=27 // pred_check
        %p209 = pneg %p73
      $region34: #{root_forward.1} parent=27 // pred_check_branch
        %211 = sbr.rel (%p209) target = $region36
      $region35: #{root_forward.1} parent=27 // pred_region
        %p212 = scmp.lt.s32.totalorder %s18, 1
        %s213 = scalar_select %p212, %s18, 1
        %p214 = scmp.lt.s32.totalorder %s19, 1
        %s215 = scalar_select %p214, %s19, 1
        %s216 = smul.addr %s213, 2
        %s217 = sadd.s32 %s215, %s216
        %s218 = smul.addr %s217, 4
        %s219 = scalar_lea.vmem %s1, %s218
      $region36: #{root_forward.1} parent=27 // pred_fallthru
        _
    $region28: #{root_forward.1} parent=5 // pred_fallthru
      _
    %p220 = scmp.le.s32.totalorder 1, %s11
    %p221 = scmp.lt.s32.totalorder %s11, 5
    %p222 = pnand %p220, %p221
    %p223 = pneg %p222
    // Predicated region
    $region37: #{root_forward.1} parent=5 // pred_check
      _
    $region38: #{root_forward.1} parent=5 // pred_check_branch
      %225 = sbr.rel (%p222) target = $region40
    $region39: #{root_forward.1} parent=5 // pred_region
      %s226 = ssub.s32 %s11, 1
      %p227 = scmp.lt.s32.totalorder %s20, 1
      %s228 = scalar_select %p227, %s20, 1
      %p229 = scmp.lt.s32.totalorder %s21, 1
      %s230 = scalar_select %p229, %s21, 1
      %s231 = smul.addr %s228, 2
      %s232 = sadd.s32 %s230, %s231
      %s233 = smul.addr %s232, 4
      %s234 = scalar_lea.vmem %s0, %s233
      %p235 = pneg %p51
      %p236 = pneg %p48
      %p237 = scmp.lt.s32.totalorder %s20, 1
      %s238 = scalar_select %p237, %s20, 1
      %p239 = scmp.lt.s32.totalorder %s21, 1
      %s240 = scalar_select %p239, %s21, 1
      %s241 = smul.addr %s238, 2
      %s242 = sadd.s32 %s240, %s241
      %s243 = smul.addr %s242, 4
      %s244 = scalar_lea.vmem %s1, %s243
      %p245 = pneg %p79
      %p246 = pneg %p76
      %p247 = pneg %p100
      %p248 = pneg %p97
      %p249 = pneg %p121
      %p250 = pneg %p118
      %p251 = pneg %p142
      %p252 = pneg %p139
      %p253 = pneg %p170
      %p254 = pneg %p167
      %p255 = scmp.lt.s32.totalorder %s20, 1
      %s256 = scalar_select %p255, %s20, 1
      %p257 = scmp.lt.s32.totalorder %s21, 1
      %s258 = scalar_select %p257, %s21, 1
      %s259 = smul.addr %s256, 2
      %s260 = sadd.s32 %s258, %s259
      %s261 = smul.addr %s260, 8
      %s262 = scalar_lea.vmem %s5, %s261
      %p263 = scmp.lt.s32.totalorder %s20, 1
      %s264 = scalar_select %p263, %s20, 1
      %p265 = scmp.lt.s32.totalorder %s21, 1
      %s266 = scalar_select %p265, %s21, 1
      %s267 = smul.addr %s264, 2
      %s268 = sadd.s32 %s266, %s267
      %s269 = smul.addr %s268, 4
      %s270 = scalar_lea.vmem %s0, %s269
      %p271 = scmp.lt.s32.totalorder %s20, 1
      %s272 = scalar_select %p271, %s20, 1
      %p273 = scmp.lt.s32.totalorder %s21, 1
      %s274 = scalar_select %p273, %s21, 1
      %s275 = smul.addr %s272, 2
      %s276 = sadd.s32 %s274, %s275
      %s277 = smul.addr %s276, 4
      %s278 = scalar_lea.vmem %s1, %s277
      %p279 = scmp.lt.s32.totalorder %s20, 1
      %s280 = scalar_select %p279, %s20, 1
      %p281 = scmp.lt.s32.totalorder %s21, 1
      %s282 = scalar_select %p281, %s21, 1
      %s283 = smul.addr %s280, 2
      %s284 = sadd.s32 %s282, %s283
      %s285 = smul.addr %s284, 8
      %s286 = scalar_lea.vmem %s5, %s285
      %v287 = vld [vmem:[%s4] sm:$0xff]
      %v288 = vld [vmem:[%s2] sm:$0xff]
      %v289 = vld [vmem:[%s270] sm:$0xf]
      %vm290 = vcmask 31744
      %v292 = vsel %vm290, %v288, 0
      %vm294 = vcmask 1043456
      %v296 = vsel %vm294, %v289, 0
      %298 = vmatprep.subr.mxu0 0.0
      %299 = vmatpush1.msra.mxu0 0.0
      %300 = vmatprep.subr.mxu0 0.0
      %301 = vmatpush1.msra.mxu0 0.0
      %302 = vmatprep.subr.mxu0 0.0
      %303 = vmatpush1.msra.mxu0 0.0
      %304 = vmatprep.subr.mxu0 0.0
      %305 = vmatpush1.msra.mxu0 0.0
      %306 = vmatprep.subr.mxu0 0.0
      %307 = vmatpush1.msra.mxu0 0.0
      %308 = vmatprep.subr.mxu0 0.0
      %309 = vmatpush1.msra.mxu0 0.0
      %310 = vmatprep.subr.mxu0 0.0
      %311 = vmatpush1.msra.mxu0 0.0
      %312 = vmatprep.subr.mxu0 0.0
      %313 = vmatpush1.msra.mxu0 0.0
      %314 = vmatprep.subr.mxu0 0.0
      %315 = vmatpush1.msra.mxu0 0.0
      %316 = vmatprep.subr.mxu0 0.0
      %317 = vmatpush1.msra.mxu0 0.0
      %318 = vmatprep.subr.mxu0 0.0
      %319 = vmatpush1.msra.mxu0 0.0
      %320 = vmatprep.subr.mxu0 0.0
      %321 = vmatpush1.msra.mxu0 0.0
      %322 = vmatprep.subr.mxu0 0.0
      %323 = vmatpush1.msra.mxu0 0.0
      %324 = vmatprep.subr.mxu0 0.0
      %325 = vmatpush1.msra.mxu0 0.0
      %326 = vmatprep.subr.mxu0 0.0
      %327 = vmatpush1.msra.mxu0 0.0
      %328 = vmatprep.subr.mxu0 0.0
      %329 = vmatpush1.msra.mxu0 %v296
      %330 = vmatprep.subr.mxu0 0.0
      %331 = vmatpush2.msra.mxu0 0.0
      %332 = vmatprep.subr.mxu0 0.0
      %333 = vmatpush2.msra.mxu0 0.0
      %334 = vmatprep.subr.mxu0 0.0
      %335 = vmatpush2.msra.mxu0 0.0
      %336 = vmatprep.subr.mxu0 0.0
      %337 = vmatpush2.msra.mxu0 0.0
      %338 = vmatprep.subr.mxu0 0.0
      %339 = vmatpush2.msra.mxu0 0.0
      %340 = vmatprep.subr.mxu0 0.0
      %341 = vmatpush2.msra.mxu0 0.0
      %342 = vmatprep.subr.mxu0 0.0
      %343 = vmatpush2.msra.mxu0 0.0
      %344 = vmatprep.subr.mxu0 0.0
      %345 = vmatpush2.msra.mxu0 0.0
      %346 = vmatprep.subr.mxu0 0.0
      %347 = vmatpush2.msra.mxu0 0.0
      %348 = vmatprep.subr.mxu0 0.0
      %349 = vmatpush2.msra.mxu0 0.0
      %350 = vmatprep.subr.mxu0 0.0
      %351 = vmatpush2.msra.mxu0 0.0
      %352 = vmatprep.subr.mxu0 0.0
      %353 = vmatpush2.msra.mxu0 0.0
      %354 = vmatprep.subr.mxu0 0.0
      %355 = vmatpush2.msra.mxu0 0.0
      %356 = vmatprep.subr.mxu0 0.0
      %357 = vmatpush2.msra.mxu0 0.0
      %358 = vmatprep.subr.mxu0 0.0
      %359 = vmatpush2.msra.mxu0 0.0
      %360 = vmatprep.subr.mxu0 0.0
      %361 = vmatpush2.msra.mxu0 0.0
      %362 = vmatprep.mubr.f32.mxu0 0.0
      %363 = vmatmul.mubr.f32.gmra.mxu0 %v292
      %v364 = vpop.f32.mrf.mxu0
      %v365 = vadd.f32 0.0, %v364
      %v366 = vpop.f32.mrf.mxu0
      %367 = vdwg.mxu0
      %369 = vset.pattern.permute.xlu0 0
      %370 = vperm.xlu0 %369, %v287
      %v371 = vpop.permute.xlu0 %370
      %v373 = vadd.f32 %v371, %v365
      %v374 = vld [vmem:[%s3] sm:$0xff]
      %v375 = vld [vmem:[%s278] sm:$0xf]
      %v377 = vsel %vm290, %v374, 0
      %v380 = vsel %vm294, %v375, 0
      %382 = vmatprep.subr.mxu0 0.0
      %383 = vmatpush1.msra.mxu0 0.0
      %384 = vmatprep.subr.mxu0 0.0
      %385 = vmatpush1.msra.mxu0 0.0
      %386 = vmatprep.subr.mxu0 0.0
      %387 = vmatpush1.msra.mxu0 0.0
      %388 = vmatprep.subr.mxu0 0.0
      %389 = vmatpush1.msra.mxu0 0.0
      %390 = vmatprep.subr.mxu0 0.0
      %391 = vmatpush1.msra.mxu0 0.0
      %392 = vmatprep.subr.mxu0 0.0
      %393 = vmatpush1.msra.mxu0 0.0
      %394 = vmatprep.subr.mxu0 0.0
      %395 = vmatpush1.msra.mxu0 0.0
      %396 = vmatprep.subr.mxu0 0.0
      %397 = vmatpush1.msra.mxu0 0.0
      %398 = vmatprep.subr.mxu0 0.0
      %399 = vmatpush1.msra.mxu0 0.0
      %400 = vmatprep.subr.mxu0 0.0
      %401 = vmatpush1.msra.mxu0 0.0
      %402 = vmatprep.subr.mxu0 0.0
      %403 = vmatpush1.msra.mxu0 0.0
      %404 = vmatprep.subr.mxu0 0.0
      %405 = vmatpush1.msra.mxu0 0.0
      %406 = vmatprep.subr.mxu0 0.0
      %407 = vmatpush1.msra.mxu0 0.0
      %408 = vmatprep.subr.mxu0 0.0
      %409 = vmatpush1.msra.mxu0 0.0
      %410 = vmatprep.subr.mxu0 0.0
      %411 = vmatpush1.msra.mxu0 0.0
      %412 = vmatprep.subr.mxu0 0.0
      %413 = vmatpush1.msra.mxu0 %v380
      %414 = vmatprep.subr.mxu0 0.0
      %415 = vmatpush2.msra.mxu0 0.0
      %416 = vmatprep.subr.mxu0 0.0
      %417 = vmatpush2.msra.mxu0 0.0
      %418 = vmatprep.subr.mxu0 0.0
      %419 = vmatpush2.msra.mxu0 0.0
      %420 = vmatprep.subr.mxu0 0.0
      %421 = vmatpush2.msra.mxu0 0.0
      %422 = vmatprep.subr.mxu0 0.0
      %423 = vmatpush2.msra.mxu0 0.0
      %424 = vmatprep.subr.mxu0 0.0
      %425 = vmatpush2.msra.mxu0 0.0
      %426 = vmatprep.subr.mxu0 0.0
      %427 = vmatpush2.msra.mxu0 0.0
      %428 = vmatprep.subr.mxu0 0.0
      %429 = vmatpush2.msra.mxu0 0.0
      %430 = vmatprep.subr.mxu0 0.0
      %431 = vmatpush2.msra.mxu0 0.0
      %432 = vmatprep.subr.mxu0 0.0
      %433 = vmatpush2.msra.mxu0 0.0
      %434 = vmatprep.subr.mxu0 0.0
      %435 = vmatpush2.msra.mxu0 0.0
      %436 = vmatprep.subr.mxu0 0.0
      %437 = vmatpush2.msra.mxu0 0.0
      %438 = vmatprep.subr.mxu0 0.0
      %439 = vmatpush2.msra.mxu0 0.0
      %440 = vmatprep.subr.mxu0 0.0
      %441 = vmatpush2.msra.mxu0 0.0
      %442 = vmatprep.subr.mxu0 0.0
      %443 = vmatpush2.msra.mxu0 0.0
      %444 = vmatprep.subr.mxu0 0.0
      %445 = vmatpush2.msra.mxu0 0.0
      %446 = vmatprep.mubr.f32.mxu0 0.0
      %447 = vmatmul.mubr.f32.gmra.mxu0 %v377
      %v448 = vpop.f32.mrf.mxu0
      %v449 = vadd.f32 0.0, %v448
      %v450 = vpop.f32.mrf.mxu0
      %451 = vdwg.mxu0
      %v452 = vadd.f32 %v373, %v449
      %v453 = vmax.f32 %v452, 0.0
      %454 = vst [vmem:[%s286] sm:$0xff] %v453
      %p455 = scmp.lt.s32.totalorder %s20, 1
      %s456 = scalar_select %p455, %s20, 1
      %p457 = scmp.lt.s32.totalorder %s21, 1
      %s458 = scalar_select %p457, %s21, 1
      %s459 = smul.addr %s456, 2
      %s460 = sadd.s32 %s458, %s459
      %s461 = smul.addr %s460, 8
      %s462 = scalar_lea.vmem %s5, %s461
      // Predicated region
      $region41: #{root_forward.1} parent=39 // pred_check
        %p463 = pneg %p167
      $region42: #{root_forward.1} parent=39 // pred_check_branch
        %465 = sbr.rel (%p463) target = $region44
      $region43: #{root_forward.1} parent=39 // pred_region
        _
      $region44: #{root_forward.1} parent=39 // pred_fallthru
        _
    $region40: #{root_forward.1} parent=5 // pred_fallthru
      _
    %p466 = scmp.le.s32.totalorder 2, %s11
    // Predicated region
    $region45: #{root_forward.1} parent=5 // pred_check
      %p467 = pneg %p466
    $region46: #{root_forward.1} parent=5 // pred_check_branch
      %469 = sbr.rel (%p467) target = $region48
    $region47: #{root_forward.1} parent=5 // pred_region
      %s470 = ssub.s32 %s11, 2
      // Predicated region
      $region49: #{root_forward.1} parent=47 // pred_check
        %p471 = pneg %p173
      $region50: #{root_forward.1} parent=47 // pred_check_branch
        %473 = sbr.rel (%p471) target = $region52
      $region51: #{root_forward.1} parent=47 // pred_region
        %p474 = scmp.lt.s32.totalorder %s22, 1
        %s475 = scalar_select %p474, %s22, 1
        %p476 = scmp.lt.s32.totalorder %s23, 1
        %s477 = scalar_select %p476, %s23, 1
        %s478 = smul.addr %s475, 2
        %s479 = sadd.s32 %s477, %s478
        %s480 = smul.addr %s479, 8
        %s481 = scalar_lea.vmem %s5, %s480
      $region52: #{root_forward.1} parent=47 // pred_fallthru
        _
    $region48: #{root_forward.1} parent=5 // pred_fallthru
      _
  $region6: #{root_forward.1} parent=0 // loop_footer
    %s15 = sadd.s32 1, %s11
  $region7: #{root_forward.1} parent=0 // loop_footer_branch
    %10 = sbr.rel target = $region3
  $region8: #{root_forward.1} parent=0 // loop_exit
    _

</llo_original>
